<compile_context>
chip_gen: v7x
topology: tpu7x:2x2x1
jax: 0.10.0
libtpu: 0.0.40
codegen_flags: <defaults>
</compile_context>

<pallas_src>
import functools

import numpy as np

import jax
import jax.numpy as jnp
from jax.experimental import pallas as pl
from jax.experimental.pallas import tpu as pltpu


# ---------------------------------------------------------------------------
# Kernels
# ---------------------------------------------------------------------------

def _rope_half_kernel(inv_half_ref, cos_ref, sin_ref):
    """Half-width compute + lane concat.  Use only when dim//2 % 128 == 0.

    inv_half_ref : (1, dim//2) f32
    cos_ref/sin_ref : (TS, dim) output dtype
    """
    i = pl.program_id(0)
    ts, dim = cos_ref.shape
    h = dim // 2
    pos = (jax.lax.broadcasted_iota(jnp.int32, (ts, h), 0) + i * ts).astype(
        jnp.float32)
    ang = pos * inv_half_ref[...]                  # (TS, dim//2), f32
    # Cast BEFORE duplication: half the converts, half the vregs on the store
    # path.  emb = cat(freqs, freqs) makes the two halves identical, so the
    # duplicate-and-store is exact.
    c = jnp.cos(ang).astype(cos_ref.dtype)
    s = jnp.sin(ang).astype(sin_ref.dtype)
    cos_ref[...] = jnp.concatenate([c, c], axis=-1)
    sin_ref[...] = jnp.concatenate([s, s], axis=-1)


def _rope_full_kernel(inv_full_ref, cos_ref, sin_ref):
    """Full-width compute, no concat.  ang[p, l] = p * inv_full[l].

    inv_full_ref : (1, dim) f32   (= cat(inv_freq, inv_freq))
    cos_ref/sin_ref : (TS, dim) output dtype
    """
    i = pl.program_id(0)
    ts, w = cos_ref.shape
    pos = (jax.lax.broadcasted_iota(jnp.int32, (ts, w), 0) + i * ts).astype(
        jnp.float32)
    ang = pos * inv_full_ref[...]
    cos_ref[...] = jnp.cos(ang).astype(cos_ref.dtype)
    sin_ref[...] = jnp.sin(ang).astype(sin_ref.dtype)


def _rope_folded_kernel(scale_ref, phase_ref, cos_ref, sin_ref):
    """Lane-dense folded output for dim < 128.

    Each folded row r packs `fold` consecutive positions; lane l holds
    (position = r*fold + l//dim, freq index = l % dim), so
        ang[r, l] = r * scale[l] + phase[l]
    with scale[l] = fold * inv_full[l % dim], phase[l] = (l//dim) * inv_full[l % dim].
    scale_ref/phase_ref : (1, fold*dim) f32
    cos_ref/sin_ref     : (TS, fold*dim) output dtype
    """
    i = pl.program_id(0)
    ts, w = cos_ref.shape
    r = (jax.lax.broadcasted_iota(jnp.int32, (ts, w), 0) + i * ts).astype(
        jnp.float32)
    ang = r * scale_ref[...] + phase_ref[...]
    cos_ref[...] = jnp.cos(ang).astype(cos_ref.dtype)
    sin_ref[...] = jnp.sin(ang).astype(sin_ref.dtype)


# ---------------------------------------------------------------------------
# Builder
# ---------------------------------------------------------------------------

def _choose_tile(rows, width, itemsize):
    """Pick a sequence-tile size from a VMEM budget.

    Per-step output footprint = 2 outputs x 2 pipeline buffers x TS x width x
    itemsize.  Budget of 8 MiB stays under the 16 MiB scoped-VMEM default on
    every generation (v5e/v6e/v7x) with headroom for the tiny resident inputs.
    """
    budget = 8 * 1024 * 1024
    ts = budget // (4 * width * itemsize)
    ts = max(8, (ts // 8) * 8)
    ts = min(ts, 2048)
    if rows > 256:
        # Ensure >= 2 grid steps so v7x's two TensorCores can both get work
        # (neutral on single-TC v5e/v6e).
        half = (((rows + 1) // 2) + 7) // 8 * 8
        ts = min(ts, half)
    if ts >= rows:
        ts = rows   # single block; block shape == full array dims is allowed
    return ts


def _rope_pallas_call(kernel, inputs, rows, width, ts, dtype):
    grid = (pl.cdiv(rows, ts),)
    in_specs = [pl.BlockSpec((1, width_i), lambda i: (0, 0))
                for width_i in (a.shape[1] for a in inputs)]
    return pl.pallas_call(
        kernel,
        out_shape=(jax.ShapeDtypeStruct((rows, width), dtype),
                   jax.ShapeDtypeStruct((rows, width), dtype)),
        grid_spec=pltpu.PrefetchScalarGridSpec(
            num_scalar_prefetch=0,
            grid=grid,
            in_specs=in_specs,
            out_specs=[pl.BlockSpec((ts, width), lambda i: (i, 0)),
                       pl.BlockSpec((ts, width), lambda i: (i, 0))],
        ),
        compiler_params=pltpu.CompilerParams(
            dimension_semantics=("parallel",)),
    )(*inputs)


@functools.partial(jax.jit, static_argnames=("seq_len", "dim", "dtype"))
def _build_rope_cache(inv_freq, seq_len, dim, dtype):
    """Returns (cos_cached, sin_cached) of shape (seq_len, dim) in `dtype`."""
    dtype = np.dtype(dtype)
    h = dim // 2
    inv_f32 = inv_freq.astype(jnp.float32)

    if h % 128 == 0:
        # ---- Case A: half-width compute + vreg-granular lane concat --------
        rows, width = seq_len, dim
        ts = _choose_tile(rows, width, dtype.itemsize)
        cos, sin = _rope_pallas_call(
            _rope_half_kernel, (inv_f32.reshape(1, h),), rows, width, ts, dtype)
        return cos, sin

    inv_full = jnp.concatenate([inv_f32, inv_f32])      # (dim,), emb freq layout

    if dim < 128 and 128 % dim == 0:
        # ---- Case B: lane-dense folding (dim < 128) -------------------------
        fold = 128 // dim
        pad_seq = ((seq_len + fold - 1) // fold) * fold
        rows, width = pad_seq // fold, fold * dim
        inv_tiled = jnp.tile(inv_full, fold)             # inv_full[l % dim]
        scale = (float(fold) * inv_tiled).reshape(1, width)
        phase = (jnp.repeat(jnp.arange(fold, dtype=jnp.float32), dim)
                 * inv_tiled).reshape(1, width)          # (l//dim)*inv_full[l%dim]
        ts = _choose_tile(rows, width, dtype.itemsize)
        cos_f, sin_f = _rope_pallas_call(
            _rope_folded_kernel, (scale, phase), rows, width, ts, dtype)
        # Row-major contiguous reshape back to (pad_seq, dim) is free.
        cos = cos_f.reshape(pad_seq, dim)
        sin = sin_f.reshape(pad_seq, dim)
        if pad_seq != seq_len:
            cos, sin = cos[:seq_len], sin[:seq_len]
        return cos, sin

    # ---- Case C: generic full-width (h not 128-aligned, dim not 128-friendly)
    rows, width = seq_len, dim
    ts = _choose_tile(rows, width, dtype.itemsize)
    cos, sin = _rope_pallas_call(
        _rope_full_kernel, (inv_full.reshape(1, width),), rows, width, ts, dtype)
    return cos, sin


# ---------------------------------------------------------------------------
# Module
# ---------------------------------------------------------------------------

class RotaryEmbedding:
    """JAX/Pallas port of the PyTorch RotaryEmbedding module."""

    def __init__(self, dim, max_position_embeddings=2048, base=10000):
        self.dim = dim
        self.max_position_embeddings = max_position_embeddings
        self.base = base
        # inv_freq = 1 / base ** (arange(0, dim, 2) / dim)
        self.inv_freq = 1.0 / (
            self.base ** (jnp.arange(0, self.dim, 2, dtype=jnp.float32) / self.dim)
        )
        # Initial cache in float32 (matches torch.get_default_dtype()).
        self._set_cos_sin_cache(max_position_embeddings, jnp.float32)

    def _set_cos_sin_cache(self, seq_len, dtype):
        self.max_seq_len_cached = seq_len
        self.cos_cached, self.sin_cached = _build_rope_cache(
            self.inv_freq, seq_len, self.dim, np.dtype(dtype))
        # Per-dtype views so forward() does not re-run astype every call.
        self._dtype_views = {
            np.dtype(dtype): (self.cos_cached, self.sin_cached)}

    def __call__(self, x, seq_len=None):
        if seq_len is None:
            # Original PyTorch module raises on None; infer from x instead.
            seq_len = x.shape[-2]
        if seq_len > self.max_seq_len_cached:
            # Rebuild directly in x.dtype (cast fused into the kernel store),
            # mirroring _set_cos_sin_cache(seq_len, device, x.dtype).  Like
            # the PyTorch original, this permanently changes the cache dtype.
            self._set_cos_sin_cache(seq_len, x.dtype)
        dt = np.dtype(x.dtype)
        if dt not in self._dtype_views:
            self._dtype_views[dt] = (self.cos_cached.astype(dt),
                                     self.sin_cached.astype(dt))
        cos, sin = self._dtype_views[dt]
        # Slice kept to preserve the original forward semantics.
        return cos[:seq_len], sin[:seq_len]


# ---------------------------------------------------------------------------
# Self-test
# ---------------------------------------------------------------------------

if __name__ == "__main__":
    def ref_cache(inv_freq, seq_len):
        t = jnp.arange(seq_len, dtype=jnp.float32)
        freqs = jnp.einsum("i,j->ij", t, inv_freq)
        emb = jnp.concatenate([freqs, freqs], axis=-1)
        return jnp.cos(emb), jnp.sin(emb)

    key = jax.random.PRNGKey(0)

    # --- primary small config: lane-dense folded path (dim < 128) -----------
    dim, max_pos, seq_len = 32, 128, 8
    x = jax.random.normal(key, (2, seq_len, dim), dtype=jnp.float32)
    rope = RotaryEmbedding(dim, max_position_embeddings=max_pos, base=10000)
    cos, sin = rope(x, seq_len=seq_len)
    jax.block_until_ready((cos, sin))
    rc, rs = ref_cache(rope.inv_freq, seq_len)
    assert cos.shape == (seq_len, dim) and sin.shape == (seq_len, dim)
    assert cos.dtype == x.dtype and sin.dtype == x.dtype
    assert jnp.allclose(cos, rc, atol=1e-5, rtol=1e-5)
    assert jnp.allclose(sin, rs, atol=1e-5, rtol=1e-5)

    # rebuild path (seq_len > cached) with fused dtype cast
    long_len = max_pos + 64
    cos2, sin2 = rope(x, seq_len=long_len)
    jax.block_until_ready((cos2, sin2))
    rc2, rs2 = ref_cache(rope.inv_freq, long_len)
    assert cos2.shape == (long_len, dim)
    assert jnp.allclose(cos2, rc2, atol=1e-5, rtol=1e-5)
    assert jnp.allclose(sin2, rs2, atol=1e-5, rtol=1e-5)

    # --- half-width + lane-concat path (dim // 2 multiple of 128) -----------
    rope_a = RotaryEmbedding(256, max_position_embeddings=64, base=10000)
    xa = jnp.ones((1, 16, 256), dtype=jnp.bfloat16)
    cos_a, sin_a = rope_a(xa, seq_len=16)
    jax.block_until_ready((cos_a, sin_a))
    rca, rsa = ref_cache(rope_a.inv_freq, 16)
    assert cos_a.dtype == jnp.bfloat16 and cos_a.shape == (16, 256)
    assert jnp.allclose(cos_a.astype(jnp.float32), rca, atol=1e-2, rtol=1e-2)
    assert jnp.allclose(sin_a.astype(jnp.float32), rsa, atol=1e-2, rtol=1e-2)

    # --- generic full-width path (dim not 128-friendly) ---------------------
    rope_c = RotaryEmbedding(192, max_position_embeddings=40, base=10000)
    xc = jnp.ones((1, 24, 192), dtype=jnp.float32)
    cos_c, sin_c = rope_c(xc, seq_len=24)
    jax.block_until_ready((cos_c, sin_c))
    rcc, rsc = ref_cache(rope_c.inv_freq, 24)
    assert cos_c.shape == (24, 192)
    assert jnp.allclose(cos_c, rcc, atol=1e-5, rtol=1e-5)
    assert jnp.allclose(sin_c, rsc, atol=1e-5, rtol=1e-5)

    print("KERNEL_OK")
</pallas_src>

<mosaic_0001>
module attributes {stable_mosaic.version = 11 : i64} {
  func.func @_rope_folded_kernel(%arg0: i32, %arg1: memref<1x128xf32, #tpu.memory_space<vmem>>, %arg2: memref<1x128xf32, #tpu.memory_space<vmem>>, %arg3: memref<32x128xf32, #tpu.memory_space<vmem>>, %arg4: memref<32x128xf32, #tpu.memory_space<vmem>>) attributes {dimension_semantics = [#tpu.dimension_semantics<parallel>], iteration_bounds = array<i64: 1>, scalar_prefetch = 0 : i64, scratch_operands = 0 : i64, tpu.core_type = #tpu.core_type<tc>, window_params = [{pipeline_mode = #tpu.pipeline_mode<synchronous>, transform_indices = @transform_0, window_bounds = array<i64: 1, 128>}, {pipeline_mode = #tpu.pipeline_mode<synchronous>, transform_indices = @transform_1, window_bounds = array<i64: 1, 128>}, {transform_indices = @transform_2, window_bounds = array<i64: 32, 128>}, {transform_indices = @transform_3, window_bounds = array<i64: 32, 128>}]} {
    %0 = tpu.iota {dimensions = array<i32: 0>} : vector<32x128xi32>
    %c32_i32 = arith.constant 32 : i32
    %1 = arith.muli %arg0, %c32_i32 : i32
    %2 = vector.broadcast %1 : i32 to vector<32x128xi32>
    %3 = arith.addi %0, %2 : vector<32x128xi32>
    %4 = arith.sitofp %3 : vector<32x128xi32> to vector<32x128xf32>
    %c0 = arith.constant 0 : index
    %c0_0 = arith.constant 0 : index
    %5 = vector.load %arg1[%c0, %c0_0] : memref<1x128xf32, #tpu.memory_space<vmem>>, vector<1x128xf32>
    %6 = vector.broadcast %5 : vector<1x128xf32> to vector<32x128xf32>
    %7 = arith.mulf %4, %6 : vector<32x128xf32>
    %c0_1 = arith.constant 0 : index
    %c0_2 = arith.constant 0 : index
    %8 = vector.load %arg2[%c0_1, %c0_2] : memref<1x128xf32, #tpu.memory_space<vmem>>, vector<1x128xf32>
    %9 = vector.broadcast %8 : vector<1x128xf32> to vector<32x128xf32>
    %10 = arith.addf %7, %9 : vector<32x128xf32>
    %11 = math.cos %10 : vector<32x128xf32>
    %c0_3 = arith.constant 0 : index
    %c0_4 = arith.constant 0 : index
    %12 = vector.load %arg3[%c0_3, %c0_4] : memref<32x128xf32, #tpu.memory_space<vmem>>, vector<32x128xf32>
    tpu.vector_store %arg3[%c0_3, %c0_4], %11 {strides = array<i32>} : memref<32x128xf32, #tpu.memory_space<vmem>>, vector<32x128xf32>,
    %13 = math.sin %10 : vector<32x128xf32>
    %c0_5 = arith.constant 0 : index
    %c0_6 = arith.constant 0 : index
    %14 = vector.load %arg4[%c0_5, %c0_6] : memref<32x128xf32, #tpu.memory_space<vmem>>, vector<32x128xf32>
    tpu.vector_store %arg4[%c0_5, %c0_6], %13 {strides = array<i32>} : memref<32x128xf32, #tpu.memory_space<vmem>>, vector<32x128xf32>,
    return
  }
  func.func @transform_0(%arg0: i32) -> (i32, i32) {
    %c0_i32 = arith.constant 0 : i32
    %c0_i32_0 = arith.constant 0 : i32
    %c0_i32_1 = arith.constant 0 : i32
    return %c0_i32, %c0_i32_0 : i32, i32
  }
  func.func @transform_1(%arg0: i32) -> (i32, i32) {
    %c0_i32 = arith.constant 0 : i32
    %c0_i32_0 = arith.constant 0 : i32
    %c0_i32_1 = arith.constant 0 : i32
    return %c0_i32, %c0_i32_0 : i32, i32
  }
  func.func @transform_2(%arg0: i32) -> (i32, i32) {
    %c0_i32 = arith.constant 0 : i32
    %c0_i32_0 = arith.constant 0 : i32
    return %arg0, %c0_i32 : i32, i32
  }
  func.func @transform_3(%arg0: i32) -> (i32, i32) {
    %c0_i32 = arith.constant 0 : i32
    %c0_i32_0 = arith.constant 0 : i32
    return %arg0, %c0_i32 : i32, i32
  }
}

</mosaic_0001>

<llo_original>
// kernel: _build_rope_cache.1
$region0: #{_build_rope_cache.1}
  #allocation0 [shape = 'u32[]', space=smem, size = 0x4, offset = 0x4, fixed_abs, tag = 'smem constant byte address 0x4 - core index']
  #allocation1 [shape = 'u32[144,128]{1,0:T(1,128)}', space=vmem, size = 0x12000, scoped, tag = 'internal scratch']
  %s0 = inlined_call_operand.vmem [shape: f32[1,128], index: 0, kind: input, shape index: {}]
  %s1 = inlined_call_operand.vmem [shape: f32[1,128], index: 1, kind: input, shape index: {}]
  %s2 = inlined_call_operand.vmem [shape: f32[32,128], index: 2, kind: output, shape index: {0}]
  %s3 = inlined_call_operand.vmem [shape: f32[32,128], index: 3, kind: output, shape index: {1}]
  %4 = xla_tuple %s2, %s3
  %s5 = sld [smem:[#allocation0]]
  $region26: #{_build_rope_cache.1} parent=0
    _
  %s7 = ssub.s32 1, %s5
  %s8 = scalar_select 0, %s7, %s5
  // Predicated region
  $region2: #{_build_rope_cache.1} parent=0 // pred_check
    _
  $region3: #{_build_rope_cache.1} parent=0 // pred_check_branch
    %10 = sbr.rel (0) target = $region5
  $region4: #{_build_rope_cache.1} parent=0 // pred_region
    _
  $region5: #{_build_rope_cache.1} parent=0 // pred_fallthru
    _
  // Predicated region
  $region6: #{_build_rope_cache.1} parent=0 // pred_check
    _
  $region7: #{_build_rope_cache.1} parent=0 // pred_check_branch
    %12 = sbr.rel (0) target = $region9
  $region8: #{_build_rope_cache.1} parent=0 // pred_region
    _
  $region9: #{_build_rope_cache.1} parent=0 // pred_fallthru
    _
  %v13 = vlaneseq
  %v14 = vshrl.u32 %v13, 7
  %v15 = vadd.s32 %v14, 8
  %v16 = vadd.s32 %v14, 16
  %v17 = vadd.s32 %v14, 24
  %s18 = smul.u32 0, 32
  %v19 = vstv %s18
  %v20 = vadd.s32 %v14, %v19
  %v21 = vadd.s32 %v15, %v19
  %v22 = vadd.s32 %v16, %v19
  %v23 = vadd.s32 %v17, %v19
  %v24 = vcvt.s32.f32 %v20
  %v25 = vcvt.s32.f32 %v21
  %v26 = vcvt.s32.f32 %v22
  %v27 = vcvt.s32.f32 %v23
  %v28 = vld [vmem:[%s0] sm:$0x1]
  %v30 = vlaneseq
  %v31 = vshrl.u32 %v30, 7
  %v32 = vsub.s32 0, %v31
  %v33 = vrot.slane %v28, %v32
  %v35 = vmul.f32 %v24, %v33
  %v36 = vmul.f32 %v25, %v33
  %v37 = vmul.f32 %v26, %v33
  %v38 = vmul.f32 %v27, %v33
  %v39 = vld [vmem:[%s1] sm:$0x1]
  %v41 = vlaneseq
  %v42 = vshrl.u32 %v41, 7
  %v43 = vsub.s32 0, %v42
  %v44 = vrot.slane %v39, %v43
  %v46 = vadd.f32 %v35, %v44
  %v47 = vadd.f32 %v36, %v44
  %v48 = vadd.f32 %v37, %v44
  %v49 = vadd.f32 %v38, %v44
  %v50 = vand.u32 2147483647, %v46
  %vm51 = vcmp.le.f32.partialorder %v50, 0.7853982
  %vm52 = vcmp.lt.s32.totalorder %v46, 0
  %v53 = vand.u32 %v46, 2139095040
  %v54 = vshrl.u32 %v53, 23
  %v55 = vsub.s32 %v54, 127
  %v56 = vand.u32 2147483647, %v46
  %v57 = vand.u32 %v56, 8388607
  %v58 = vor.u32 %v57, 8388608
  %v59 = vsub.s32 0, %v58
  %v60 = vadd.s32 %v55, 1
  %vm61 = vcmp.gt.s32.totalorder %v60, 0
  %v62 = vsel %vm61, %v60, 0
  %v63 = vshrl.u32 %v62, 5
  %v64 = vand.u32 %v62, 31
  %v65 = vsub.s32 32, %v64
  %v66 = vshrl.u32 683565275, %v65
  %v67 = vshll.u32 683565275, %v64
  %v68 = vshrl.u32 2475754826, %v65
  %v69 = vor.u32 %v67, %v68
  %v70 = vshll.u32 2475754826, %v64
  %v71 = vshrl.u32 2131351028, %v65
  %v72 = vor.u32 %v70, %v71
  %v73 = vshll.u32 2131351028, %v64
  %v74 = vshrl.u32 2102212464, %v65
  %v75 = vor.u32 %v73, %v74
  %v76 = vshll.u32 2102212464, %v64
  %v77 = vshrl.u32 920167782, %v65
  %v78 = vor.u32 %v76, %v77
  %v79 = vshll.u32 920167782, %v64
  %v80 = vshrl.u32 1326507024, %v65
  %v81 = vor.u32 %v79, %v80
  %vm82 = vcmp.lt.s32.totalorder %v63, 1
  %vm83 = vcmp.lt.s32.totalorder %v63, 2
  %vm84 = vcmp.lt.s32.totalorder %v63, 3
  %vm85 = vcmp.lt.s32.totalorder %v63, 4
  %v86 = vsel %vm82, %v66, %v69
  %v87 = vsel %vm85, %v75, 2102212464
  %v88 = vsel %vm84, %v72, %v87
  %v89 = vsel %vm83, %v86, %v88
  %v90 = vsel %vm82, %v69, %v72
  %v91 = vsel %vm85, %v78, 920167782
  %v92 = vsel %vm84, %v75, %v91
  %v93 = vsel %vm83, %v90, %v92
  %v94 = vsel %vm82, %v72, %v75
  %v95 = vsel %vm85, %v81, 1326507024
  %v96 = vsel %vm84, %v78, %v95
  %v97 = vsel %vm83, %v94, %v96
  %v98 = vshll.u32 %v58, 8
  %v99 = vmul.u32.u64.compose %v98, %v97
  %v100 = vextract.low.u32 %v99
  %v101 = vextract.high.u32 %v99
  %v102 = vmul.u32.u64.compose %v98, %v93
  %v103 = vextract.low.u32 %v102
  %v104 = vextract.high.u32 %v102
  %v105 = vmul.u32 %v98, %v89
  %v106 = vadd.s32 %v101, %v103
  %vm107 = vc.u32 %v101, %v103
  %v108 = vadd.s32 %v104, 1
  %v109 = vsel %vm107, %v108, %v104
  %v110 = vadd.s32 %v105, %v109
  %v111 = vadd.s32 %v110, 536870912
  %v112 = vshrl.u32 %v111, 30
  %v113 = vshll.u32 %v112, 30
  %v114 = vsub.s32 %v110, %v113
  %vm115 = vcmp.lt.s32.totalorder %v114, 0
  %v116 = vsub.s32 0, %v114
  %v117 = vsel %vm115, %v116, %v114
  %v118 = vclz %v117
  %v119 = vsub.s32 %v118, 2
  %vm120 = vcmp.gt.s32.totalorder 0, %v119
  %v121 = vsel %vm120, 0, %v119
  %v122 = vsub.s32 32, %v121
  %v123 = vshll.u32 %v114, %v121
  %v124 = vshrl.u32 %v106, %v122
  %v125 = vor.u32 %v123, %v124
  %v126 = vsub.s32 4294967266, %v121
  %v127 = vadd.s32 %v126, 127
  %v128 = vshll.u32 %v127, 23
  %v129 = vor.u32 4788187, %v128
  %v130 = vand.u32 2147483647, %v129
  %v132 = vcvt.s32.f32 %v125
  %v133 = vmul.f32 %v132, %v130
  %v134 = vxor.u32 %v133, 2147483648
  %v135 = vsel %vm52, %v134, %v133
  %v136 = vsub.s32 4, %v112
  %v137 = vsel %vm52, %v136, %v112
  %v138 = vsel %vm51, %v46, %v135
  %v139 = vsel %vm51, 0, %v137
  %v140 = vcosq.f32.pop %v138
  %v141 = vsinq.f32.pop %v138
  %vm142 = vweird.f32 %v46
  %v143 = vand.u32 %v139, 3
  %vm144 = vcmp.lt.s32.totalorder %v143, 2
  %vm145 = vcmp.eq.s32.totalorder %v143, 0
  %v146 = vxor.u32 %v141, 2147483648
  %v147 = vsel %vm145, %v140, %v146
  %vm148 = vcmp.eq.s32.totalorder %v143, 2
  %v149 = vxor.u32 %v140, 2147483648
  %v150 = vsel %vm148, %v149, %v141
  %v151 = vsel %vm144, %v147, %v150
  %v152 = vsel %vm142, nan, %v151
  %v153 = vand.u32 2147483647, %v47
  %vm154 = vcmp.le.f32.partialorder %v153, 0.7853982
  %vm155 = vcmp.lt.s32.totalorder %v47, 0
  %v156 = vand.u32 %v47, 2139095040
  %v157 = vshrl.u32 %v156, 23
  %v158 = vsub.s32 %v157, 127
  %v159 = vand.u32 2147483647, %v47
  %v160 = vand.u32 %v159, 8388607
  %v161 = vor.u32 %v160, 8388608
  %v162 = vsub.s32 0, %v161
  %v163 = vadd.s32 %v158, 1
  %vm164 = vcmp.gt.s32.totalorder %v163, 0
  %v165 = vsel %vm164, %v163, 0
  %v166 = vshrl.u32 %v165, 5
  %v167 = vand.u32 %v165, 31
  %v168 = vsub.s32 32, %v167
  %v169 = vshrl.u32 683565275, %v168
  %v170 = vshll.u32 683565275, %v167
  %v171 = vshrl.u32 2475754826, %v168
  %v172 = vor.u32 %v170, %v171
  %v173 = vshll.u32 2475754826, %v167
  %v174 = vshrl.u32 2131351028, %v168
  %v175 = vor.u32 %v173, %v174
  %v176 = vshll.u32 2131351028, %v167
  %v177 = vshrl.u32 2102212464, %v168
  %v178 = vor.u32 %v176, %v177
  %v179 = vshll.u32 2102212464, %v167
  %v180 = vshrl.u32 920167782, %v168
  %v181 = vor.u32 %v179, %v180
  %v182 = vshll.u32 920167782, %v167
  %v183 = vshrl.u32 1326507024, %v168
  %v184 = vor.u32 %v182, %v183
  %vm185 = vcmp.lt.s32.totalorder %v166, 1
  %vm186 = vcmp.lt.s32.totalorder %v166, 2
  %vm187 = vcmp.lt.s32.totalorder %v166, 3
  %vm188 = vcmp.lt.s32.totalorder %v166, 4
  %v189 = vsel %vm185, %v169, %v172
  %v190 = vsel %vm188, %v178, 2102212464
  %v191 = vsel %vm187, %v175, %v190
  %v192 = vsel %vm186, %v189, %v191
  %v193 = vsel %vm185, %v172, %v175
  %v194 = vsel %vm188, %v181, 920167782
  %v195 = vsel %vm187, %v178, %v194
  %v196 = vsel %vm186, %v193, %v195
  %v197 = vsel %vm185, %v175, %v178
  %v198 = vsel %vm188, %v184, 1326507024
  %v199 = vsel %vm187, %v181, %v198
  %v200 = vsel %vm186, %v197, %v199
  %v201 = vshll.u32 %v161, 8
  %v202 = vmul.u32.u64.compose %v201, %v200
  %v203 = vextract.low.u32 %v202
  %v204 = vextract.high.u32 %v202
  %v205 = vmul.u32.u64.compose %v201, %v196
  %v206 = vextract.low.u32 %v205
  %v207 = vextract.high.u32 %v205
  %v208 = vmul.u32 %v201, %v192
  %v209 = vadd.s32 %v204, %v206
  %vm210 = vc.u32 %v204, %v206
  %v211 = vadd.s32 %v207, 1
  %v212 = vsel %vm210, %v211, %v207
  %v213 = vadd.s32 %v208, %v212
  %v214 = vadd.s32 %v213, 536870912
  %v215 = vshrl.u32 %v214, 30
  %v216 = vshll.u32 %v215, 30
  %v217 = vsub.s32 %v213, %v216
  %vm218 = vcmp.lt.s32.totalorder %v217, 0
  %v219 = vsub.s32 0, %v217
  %v220 = vsel %vm218, %v219, %v217
  %v221 = vclz %v220
  %v222 = vsub.s32 %v221, 2
  %vm223 = vcmp.gt.s32.totalorder 0, %v222
  %v224 = vsel %vm223, 0, %v222
  %v225 = vsub.s32 32, %v224
  %v226 = vshll.u32 %v217, %v224
  %v227 = vshrl.u32 %v209, %v225
  %v228 = vor.u32 %v226, %v227
  %v229 = vsub.s32 4294967266, %v224
  %v230 = vadd.s32 %v229, 127
  %v231 = vshll.u32 %v230, 23
  %v232 = vor.u32 4788187, %v231
  %v233 = vand.u32 2147483647, %v232
  %v235 = vcvt.s32.f32 %v228
  %v236 = vmul.f32 %v235, %v233
  %v237 = vxor.u32 %v236, 2147483648
  %v238 = vsel %vm155, %v237, %v236
  %v239 = vsub.s32 4, %v215
  %v240 = vsel %vm155, %v239, %v215
  %v241 = vsel %vm154, %v47, %v238
  %v242 = vsel %vm154, 0, %v240
  %v243 = vcosq.f32.pop %v241
  %v244 = vsinq.f32.pop %v241
  %vm245 = vweird.f32 %v47
  %v246 = vand.u32 %v242, 3
  %vm247 = vcmp.lt.s32.totalorder %v246, 2
  %vm248 = vcmp.eq.s32.totalorder %v246, 0
  %v249 = vxor.u32 %v244, 2147483648
  %v250 = vsel %vm248, %v243, %v249
  %vm251 = vcmp.eq.s32.totalorder %v246, 2
  %v252 = vxor.u32 %v243, 2147483648
  %v253 = vsel %vm251, %v252, %v244
  %v254 = vsel %vm247, %v250, %v253
  %v255 = vsel %vm245, nan, %v254
  %v256 = vand.u32 2147483647, %v48
  %vm257 = vcmp.le.f32.partialorder %v256, 0.7853982
  %vm258 = vcmp.lt.s32.totalorder %v48, 0
  %v259 = vand.u32 %v48, 2139095040
  %v260 = vshrl.u32 %v259, 23
  %v261 = vsub.s32 %v260, 127
  %v262 = vand.u32 2147483647, %v48
  %v263 = vand.u32 %v262, 8388607
  %v264 = vor.u32 %v263, 8388608
  %v265 = vsub.s32 0, %v264
  %v266 = vadd.s32 %v261, 1
  %vm267 = vcmp.gt.s32.totalorder %v266, 0
  %v268 = vsel %vm267, %v266, 0
  %v269 = vshrl.u32 %v268, 5
  %v270 = vand.u32 %v268, 31
  %v271 = vsub.s32 32, %v270
  %v272 = vshrl.u32 683565275, %v271
  %v273 = vshll.u32 683565275, %v270
  %v274 = vshrl.u32 2475754826, %v271
  %v275 = vor.u32 %v273, %v274
  %v276 = vshll.u32 2475754826, %v270
  %v277 = vshrl.u32 2131351028, %v271
  %v278 = vor.u32 %v276, %v277
  %v279 = vshll.u32 2131351028, %v270
  %v280 = vshrl.u32 2102212464, %v271
  %v281 = vor.u32 %v279, %v280
  %v282 = vshll.u32 2102212464, %v270
  %v283 = vshrl.u32 920167782, %v271
  %v284 = vor.u32 %v282, %v283
  %v285 = vshll.u32 920167782, %v270
  %v286 = vshrl.u32 1326507024, %v271
  %v287 = vor.u32 %v285, %v286
  %vm288 = vcmp.lt.s32.totalorder %v269, 1
  %vm289 = vcmp.lt.s32.totalorder %v269, 2
  %vm290 = vcmp.lt.s32.totalorder %v269, 3
  %vm291 = vcmp.lt.s32.totalorder %v269, 4
  %v292 = vsel %vm288, %v272, %v275
  %v293 = vsel %vm291, %v281, 2102212464
  %v294 = vsel %vm290, %v278, %v293
  %v295 = vsel %vm289, %v292, %v294
  %v296 = vsel %vm288, %v275, %v278
  %v297 = vsel %vm291, %v284, 920167782
  %v298 = vsel %vm290, %v281, %v297
  %v299 = vsel %vm289, %v296, %v298
  %v300 = vsel %vm288, %v278, %v281
  %v301 = vsel %vm291, %v287, 1326507024
  %v302 = vsel %vm290, %v284, %v301
  %v303 = vsel %vm289, %v300, %v302
  %v304 = vshll.u32 %v264, 8
  %v305 = vmul.u32.u64.compose %v304, %v303
  %v306 = vextract.low.u32 %v305
  %v307 = vextract.high.u32 %v305
  %v308 = vmul.u32.u64.compose %v304, %v299
  %v309 = vextract.low.u32 %v308
  %v310 = vextract.high.u32 %v308
  %v311 = vmul.u32 %v304, %v295
  %v312 = vadd.s32 %v307, %v309
  %vm313 = vc.u32 %v307, %v309
  %v314 = vadd.s32 %v310, 1
  %v315 = vsel %vm313, %v314, %v310
  %v316 = vadd.s32 %v311, %v315
  %v317 = vadd.s32 %v316, 536870912
  %v318 = vshrl.u32 %v317, 30
  %v319 = vshll.u32 %v318, 30
  %v320 = vsub.s32 %v316, %v319
  %vm321 = vcmp.lt.s32.totalorder %v320, 0
  %v322 = vsub.s32 0, %v320
  %v323 = vsel %vm321, %v322, %v320
  %v324 = vclz %v323
  %v325 = vsub.s32 %v324, 2
  %vm326 = vcmp.gt.s32.totalorder 0, %v325
  %v327 = vsel %vm326, 0, %v325
  %v328 = vsub.s32 32, %v327
  %v329 = vshll.u32 %v320, %v327
  %v330 = vshrl.u32 %v312, %v328
  %v331 = vor.u32 %v329, %v330
  %v332 = vsub.s32 4294967266, %v327
  %v333 = vadd.s32 %v332, 127
  %v334 = vshll.u32 %v333, 23
  %v335 = vor.u32 4788187, %v334
  %v336 = vand.u32 2147483647, %v335
  %v338 = vcvt.s32.f32 %v331
  %v339 = vmul.f32 %v338, %v336
  %v340 = vxor.u32 %v339, 2147483648
  %v341 = vsel %vm258, %v340, %v339
  %v342 = vsub.s32 4, %v318
  %v343 = vsel %vm258, %v342, %v318
  %v344 = vsel %vm257, %v48, %v341
  %v345 = vsel %vm257, 0, %v343
  %v346 = vcosq.f32.pop %v344
  %v347 = vsinq.f32.pop %v344
  %vm348 = vweird.f32 %v48
  %v349 = vand.u32 %v345, 3
  %vm350 = vcmp.lt.s32.totalorder %v349, 2
  %vm351 = vcmp.eq.s32.totalorder %v349, 0
  %v352 = vxor.u32 %v347, 2147483648
  %v353 = vsel %vm351, %v346, %v352
  %vm354 = vcmp.eq.s32.totalorder %v349, 2
  %v355 = vxor.u32 %v346, 2147483648
  %v356 = vsel %vm354, %v355, %v347
  %v357 = vsel %vm350, %v353, %v356
  %v358 = vsel %vm348, nan, %v357
  %v359 = vand.u32 2147483647, %v49
  %vm360 = vcmp.le.f32.partialorder %v359, 0.7853982
  %vm361 = vcmp.lt.s32.totalorder %v49, 0
  %v362 = vand.u32 %v49, 2139095040
  %v363 = vshrl.u32 %v362, 23
  %v364 = vsub.s32 %v363, 127
  %v365 = vand.u32 2147483647, %v49
  %v366 = vand.u32 %v365, 8388607
  %v367 = vor.u32 %v366, 8388608
  %v368 = vsub.s32 0, %v367
  %v369 = vadd.s32 %v364, 1
  %vm370 = vcmp.gt.s32.totalorder %v369, 0
  %v371 = vsel %vm370, %v369, 0
  %v372 = vshrl.u32 %v371, 5
  %v373 = vand.u32 %v371, 31
  %v374 = vsub.s32 32, %v373
  %v375 = vshrl.u32 683565275, %v374
  %v376 = vshll.u32 683565275, %v373
  %v377 = vshrl.u32 2475754826, %v374
  %v378 = vor.u32 %v376, %v377
  %v379 = vshll.u32 2475754826, %v373
  %v380 = vshrl.u32 2131351028, %v374
  %v381 = vor.u32 %v379, %v380
  %v382 = vshll.u32 2131351028, %v373
  %v383 = vshrl.u32 2102212464, %v374
  %v384 = vor.u32 %v382, %v383
  %v385 = vshll.u32 2102212464, %v373
  %v386 = vshrl.u32 920167782, %v374
  %v387 = vor.u32 %v385, %v386
  %v388 = vshll.u32 920167782, %v373
  %v389 = vshrl.u32 1326507024, %v374
  %v390 = vor.u32 %v388, %v389
  %vm391 = vcmp.lt.s32.totalorder %v372, 1
  %vm392 = vcmp.lt.s32.totalorder %v372, 2
  %vm393 = vcmp.lt.s32.totalorder %v372, 3
  %vm394 = vcmp.lt.s32.totalorder %v372, 4
  %v395 = vsel %vm391, %v375, %v378
  %v396 = vsel %vm394, %v384, 2102212464
  %v397 = vsel %vm393, %v381, %v396
  %v398 = vsel %vm392, %v395, %v397
  %v399 = vsel %vm391, %v378, %v381
  %v400 = vsel %vm394, %v387, 920167782
  %v401 = vsel %vm393, %v384, %v400
  %v402 = vsel %vm392, %v399, %v401
  %v403 = vsel %vm391, %v381, %v384
  %v404 = vsel %vm394, %v390, 1326507024
  %v405 = vsel %vm393, %v387, %v404
  %v406 = vsel %vm392, %v403, %v405
  %v407 = vshll.u32 %v367, 8
  %v408 = vmul.u32.u64.compose %v407, %v406
  %v409 = vextract.low.u32 %v408
  %v410 = vextract.high.u32 %v408
  %v411 = vmul.u32.u64.compose %v407, %v402
  %v412 = vextract.low.u32 %v411
  %v413 = vextract.high.u32 %v411
  %v414 = vmul.u32 %v407, %v398
  %v415 = vadd.s32 %v410, %v412
  %vm416 = vc.u32 %v410, %v412
  %v417 = vadd.s32 %v413, 1
  %v418 = vsel %vm416, %v417, %v413
  %v419 = vadd.s32 %v414, %v418
  %v420 = vadd.s32 %v419, 536870912
  %v421 = vshrl.u32 %v420, 30
  %v422 = vshll.u32 %v421, 30
  %v423 = vsub.s32 %v419, %v422
  %vm424 = vcmp.lt.s32.totalorder %v423, 0
  %v425 = vsub.s32 0, %v423
  %v426 = vsel %vm424, %v425, %v423
  %v427 = vclz %v426
  %v428 = vsub.s32 %v427, 2
  %vm429 = vcmp.gt.s32.totalorder 0, %v428
  %v430 = vsel %vm429, 0, %v428
  %v431 = vsub.s32 32, %v430
  %v432 = vshll.u32 %v423, %v430
  %v433 = vshrl.u32 %v415, %v431
  %v434 = vor.u32 %v432, %v433
  %v435 = vsub.s32 4294967266, %v430
  %v436 = vadd.s32 %v435, 127
  %v437 = vshll.u32 %v436, 23
  %v438 = vor.u32 4788187, %v437
  %v439 = vand.u32 2147483647, %v438
  %v441 = vcvt.s32.f32 %v434
  %v442 = vmul.f32 %v441, %v439
  %v443 = vxor.u32 %v442, 2147483648
  %v444 = vsel %vm361, %v443, %v442
  %v445 = vsub.s32 4, %v421
  %v446 = vsel %vm361, %v445, %v421
  %v447 = vsel %vm360, %v49, %v444
  %v448 = vsel %vm360, 0, %v446
  %v449 = vcosq.f32.pop %v447
  %v450 = vsinq.f32.pop %v447
  %vm451 = vweird.f32 %v49
  %v452 = vand.u32 %v448, 3
  %vm453 = vcmp.lt.s32.totalorder %v452, 2
  %vm454 = vcmp.eq.s32.totalorder %v452, 0
  %v455 = vxor.u32 %v450, 2147483648
  %v456 = vsel %vm454, %v449, %v455
  %vm457 = vcmp.eq.s32.totalorder %v452, 2
  %v458 = vxor.u32 %v449, 2147483648
  %v459 = vsel %vm457, %v458, %v450
  %v460 = vsel %vm453, %v456, %v459
  %v461 = vsel %vm451, nan, %v460
  %462 = vst [vmem:[%s2] sm:$0xff] %v152
  %463 = vst [vmem:[%s2 + $0x8] sm:$0xff] %v255
  %464 = vst [vmem:[%s2 + $0x10] sm:$0xff] %v358
  %465 = vst [vmem:[%s2 + $0x18] sm:$0xff] %v461
  %v466 = vand.u32 2147483647, %v46
  %vm467 = vcmp.le.f32.partialorder %v466, 0.7853982
  %vm468 = vcmp.lt.s32.totalorder %v46, 0
  %v469 = vand.u32 %v46, 2139095040
  %v470 = vshrl.u32 %v469, 23
  %v471 = vsub.s32 %v470, 127
  %v472 = vand.u32 2147483647, %v46
  %v473 = vand.u32 %v472, 8388607
  %v474 = vor.u32 %v473, 8388608
  %v475 = vsub.s32 0, %v474
  %v476 = vadd.s32 %v471, 1
  %vm477 = vcmp.gt.s32.totalorder %v476, 0
  %v478 = vsel %vm477, %v476, 0
  %v479 = vshrl.u32 %v478, 5
  %v480 = vand.u32 %v478, 31
  %v481 = vsub.s32 32, %v480
  %v482 = vshrl.u32 683565275, %v481
  %v483 = vshll.u32 683565275, %v480
  %v484 = vshrl.u32 2475754826, %v481
  %v485 = vor.u32 %v483, %v484
  %v486 = vshll.u32 2475754826, %v480
  %v487 = vshrl.u32 2131351028, %v481
  %v488 = vor.u32 %v486, %v487
  %v489 = vshll.u32 2131351028, %v480
  %v490 = vshrl.u32 2102212464, %v481
  %v491 = vor.u32 %v489, %v490
  %v492 = vshll.u32 2102212464, %v480
  %v493 = vshrl.u32 920167782, %v481
  %v494 = vor.u32 %v492, %v493
  %v495 = vshll.u32 920167782, %v480
  %v496 = vshrl.u32 1326507024, %v481
  %v497 = vor.u32 %v495, %v496
  %vm498 = vcmp.lt.s32.totalorder %v479, 1
  %vm499 = vcmp.lt.s32.totalorder %v479, 2
  %vm500 = vcmp.lt.s32.totalorder %v479, 3
  %vm501 = vcmp.lt.s32.totalorder %v479, 4
  %v502 = vsel %vm498, %v482, %v485
  %v503 = vsel %vm501, %v491, 2102212464
  %v504 = vsel %vm500, %v488, %v503
  %v505 = vsel %vm499, %v502, %v504
  %v506 = vsel %vm498, %v485, %v488
  %v507 = vsel %vm501, %v494, 920167782
  %v508 = vsel %vm500, %v491, %v507
  %v509 = vsel %vm499, %v506, %v508
  %v510 = vsel %vm498, %v488, %v491
  %v511 = vsel %vm501, %v497, 1326507024
  %v512 = vsel %vm500, %v494, %v511
  %v513 = vsel %vm499, %v510, %v512
  %v514 = vshll.u32 %v474, 8
  %v515 = vmul.u32.u64.compose %v514, %v513
  %v516 = vextract.low.u32 %v515
  %v517 = vextract.high.u32 %v515
  %v518 = vmul.u32.u64.compose %v514, %v509
  %v519 = vextract.low.u32 %v518
  %v520 = vextract.high.u32 %v518
  %v521 = vmul.u32 %v514, %v505
  %v522 = vadd.s32 %v517, %v519
  %vm523 = vc.u32 %v517, %v519
  %v524 = vadd.s32 %v520, 1
  %v525 = vsel %vm523, %v524, %v520
  %v526 = vadd.s32 %v521, %v525
  %v527 = vadd.s32 %v526, 536870912
  %v528 = vshrl.u32 %v527, 30
  %v529 = vshll.u32 %v528, 30
  %v530 = vsub.s32 %v526, %v529
  %vm531 = vcmp.lt.s32.totalorder %v530, 0
  %v532 = vsub.s32 0, %v530
  %v533 = vsel %vm531, %v532, %v530
  %v534 = vclz %v533
  %v535 = vsub.s32 %v534, 2
  %vm536 = vcmp.gt.s32.totalorder 0, %v535
  %v537 = vsel %vm536, 0, %v535
  %v538 = vsub.s32 32, %v537
  %v539 = vshll.u32 %v530, %v537
  %v540 = vshrl.u32 %v522, %v538
  %v541 = vor.u32 %v539, %v540
  %v542 = vsub.s32 4294967266, %v537
  %v543 = vadd.s32 %v542, 127
  %v544 = vshll.u32 %v543, 23
  %v545 = vor.u32 4788187, %v544
  %v546 = vand.u32 2147483647, %v545
  %v548 = vcvt.s32.f32 %v541
  %v549 = vmul.f32 %v548, %v546
  %v550 = vxor.u32 %v549, 2147483648
  %v551 = vsel %vm468, %v550, %v549
  %v552 = vsub.s32 4, %v528
  %v553 = vsel %vm468, %v552, %v528
  %v554 = vsel %vm467, %v46, %v551
  %v555 = vsel %vm467, 0, %v553
  %v556 = vcosq.f32.pop %v554
  %v557 = vsinq.f32.pop %v554
  %vm558 = vweird.f32 %v46
  %v559 = vadd.s32 %v555, 3
  %v560 = vand.u32 %v559, 3
  %vm561 = vcmp.lt.s32.totalorder %v560, 2
  %vm562 = vcmp.eq.s32.totalorder %v560, 0
  %v563 = vxor.u32 %v557, 2147483648
  %v564 = vsel %vm562, %v556, %v563
  %vm565 = vcmp.eq.s32.totalorder %v560, 2
  %v566 = vxor.u32 %v556, 2147483648
  %v567 = vsel %vm565, %v566, %v557
  %v568 = vsel %vm561, %v564, %v567
  %v569 = vsel %vm558, nan, %v568
  %v570 = vand.u32 2147483647, %v47
  %vm571 = vcmp.le.f32.partialorder %v570, 0.7853982
  %vm572 = vcmp.lt.s32.totalorder %v47, 0
  %v573 = vand.u32 %v47, 2139095040
  %v574 = vshrl.u32 %v573, 23
  %v575 = vsub.s32 %v574, 127
  %v576 = vand.u32 2147483647, %v47
  %v577 = vand.u32 %v576, 8388607
  %v578 = vor.u32 %v577, 8388608
  %v579 = vsub.s32 0, %v578
  %v580 = vadd.s32 %v575, 1
  %vm581 = vcmp.gt.s32.totalorder %v580, 0
  %v582 = vsel %vm581, %v580, 0
  %v583 = vshrl.u32 %v582, 5
  %v584 = vand.u32 %v582, 31
  %v585 = vsub.s32 32, %v584
  %v586 = vshrl.u32 683565275, %v585
  %v587 = vshll.u32 683565275, %v584
  %v588 = vshrl.u32 2475754826, %v585
  %v589 = vor.u32 %v587, %v588
  %v590 = vshll.u32 2475754826, %v584
  %v591 = vshrl.u32 2131351028, %v585
  %v592 = vor.u32 %v590, %v591
  %v593 = vshll.u32 2131351028, %v584
  %v594 = vshrl.u32 2102212464, %v585
  %v595 = vor.u32 %v593, %v594
  %v596 = vshll.u32 2102212464, %v584
  %v597 = vshrl.u32 920167782, %v585
  %v598 = vor.u32 %v596, %v597
  %v599 = vshll.u32 920167782, %v584
  %v600 = vshrl.u32 1326507024, %v585
  %v601 = vor.u32 %v599, %v600
  %vm602 = vcmp.lt.s32.totalorder %v583, 1
  %vm603 = vcmp.lt.s32.totalorder %v583, 2
  %vm604 = vcmp.lt.s32.totalorder %v583, 3
  %vm605 = vcmp.lt.s32.totalorder %v583, 4
  %v606 = vsel %vm602, %v586, %v589
  %v607 = vsel %vm605, %v595, 2102212464
  %v608 = vsel %vm604, %v592, %v607
  %v609 = vsel %vm603, %v606, %v608
  %v610 = vsel %vm602, %v589, %v592
  %v611 = vsel %vm605, %v598, 920167782
  %v612 = vsel %vm604, %v595, %v611
  %v613 = vsel %vm603, %v610, %v612
  %v614 = vsel %vm602, %v592, %v595
  %v615 = vsel %vm605, %v601, 1326507024
  %v616 = vsel %vm604, %v598, %v615
  %v617 = vsel %vm603, %v614, %v616
  %v618 = vshll.u32 %v578, 8
  %v619 = vmul.u32.u64.compose %v618, %v617
  %v620 = vextract.low.u32 %v619
  %v621 = vextract.high.u32 %v619
  %v622 = vmul.u32.u64.compose %v618, %v613
  %v623 = vextract.low.u32 %v622
  %v624 = vextract.high.u32 %v622
  %v625 = vmul.u32 %v618, %v609
  %v626 = vadd.s32 %v621, %v623
  %vm627 = vc.u32 %v621, %v623
  %v628 = vadd.s32 %v624, 1
  %v629 = vsel %vm627, %v628, %v624
  %v630 = vadd.s32 %v625, %v629
  %v631 = vadd.s32 %v630, 536870912
  %v632 = vshrl.u32 %v631, 30
  %v633 = vshll.u32 %v632, 30
  %v634 = vsub.s32 %v630, %v633
  %vm635 = vcmp.lt.s32.totalorder %v634, 0
  %v636 = vsub.s32 0, %v634
  %v637 = vsel %vm635, %v636, %v634
  %v638 = vclz %v637
  %v639 = vsub.s32 %v638, 2
  %vm640 = vcmp.gt.s32.totalorder 0, %v639
  %v641 = vsel %vm640, 0, %v639
  %v642 = vsub.s32 32, %v641
  %v643 = vshll.u32 %v634, %v641
  %v644 = vshrl.u32 %v626, %v642
  %v645 = vor.u32 %v643, %v644
  %v646 = vsub.s32 4294967266, %v641
  %v647 = vadd.s32 %v646, 127
  %v648 = vshll.u32 %v647, 23
  %v649 = vor.u32 4788187, %v648
  %v650 = vand.u32 2147483647, %v649
  %v652 = vcvt.s32.f32 %v645
  %v653 = vmul.f32 %v652, %v650
  %v654 = vxor.u32 %v653, 2147483648
  %v655 = vsel %vm572, %v654, %v653
  %v656 = vsub.s32 4, %v632
  %v657 = vsel %vm572, %v656, %v632
  %v658 = vsel %vm571, %v47, %v655
  %v659 = vsel %vm571, 0, %v657
  %v660 = vcosq.f32.pop %v658
  %v661 = vsinq.f32.pop %v658
  %vm662 = vweird.f32 %v47
  %v663 = vadd.s32 %v659, 3
  %v664 = vand.u32 %v663, 3
  %vm665 = vcmp.lt.s32.totalorder %v664, 2
  %vm666 = vcmp.eq.s32.totalorder %v664, 0
  %v667 = vxor.u32 %v661, 2147483648
  %v668 = vsel %vm666, %v660, %v667
  %vm669 = vcmp.eq.s32.totalorder %v664, 2
  %v670 = vxor.u32 %v660, 2147483648
  %v671 = vsel %vm669, %v670, %v661
  %v672 = vsel %vm665, %v668, %v671
  %v673 = vsel %vm662, nan, %v672
  %v674 = vand.u32 2147483647, %v48
  %vm675 = vcmp.le.f32.partialorder %v674, 0.7853982
  %vm676 = vcmp.lt.s32.totalorder %v48, 0
  %v677 = vand.u32 %v48, 2139095040
  %v678 = vshrl.u32 %v677, 23
  %v679 = vsub.s32 %v678, 127
  %v680 = vand.u32 2147483647, %v48
  %v681 = vand.u32 %v680, 8388607
  %v682 = vor.u32 %v681, 8388608
  %v683 = vsub.s32 0, %v682
  %v684 = vadd.s32 %v679, 1
  %vm685 = vcmp.gt.s32.totalorder %v684, 0
  %v686 = vsel %vm685, %v684, 0
  %v687 = vshrl.u32 %v686, 5
  %v688 = vand.u32 %v686, 31
  %v689 = vsub.s32 32, %v688
  %v690 = vshrl.u32 683565275, %v689
  %v691 = vshll.u32 683565275, %v688
  %v692 = vshrl.u32 2475754826, %v689
  %v693 = vor.u32 %v691, %v692
  %v694 = vshll.u32 2475754826, %v688
  %v695 = vshrl.u32 2131351028, %v689
  %v696 = vor.u32 %v694, %v695
  %v697 = vshll.u32 2131351028, %v688
  %v698 = vshrl.u32 2102212464, %v689
  %v699 = vor.u32 %v697, %v698
  %v700 = vshll.u32 2102212464, %v688
  %v701 = vshrl.u32 920167782, %v689
  %v702 = vor.u32 %v700, %v701
  %v703 = vshll.u32 920167782, %v688
  %v704 = vshrl.u32 1326507024, %v689
  %v705 = vor.u32 %v703, %v704
  %vm706 = vcmp.lt.s32.totalorder %v687, 1
  %vm707 = vcmp.lt.s32.totalorder %v687, 2
  %vm708 = vcmp.lt.s32.totalorder %v687, 3
  %vm709 = vcmp.lt.s32.totalorder %v687, 4
  %v710 = vsel %vm706, %v690, %v693
  %v711 = vsel %vm709, %v699, 2102212464
  %v712 = vsel %vm708, %v696, %v711
  %v713 = vsel %vm707, %v710, %v712
  %v714 = vsel %vm706, %v693, %v696
  %v715 = vsel %vm709, %v702, 920167782
  %v716 = vsel %vm708, %v699, %v715
  %v717 = vsel %vm707, %v714, %v716
  %v718 = vsel %vm706, %v696, %v699
  %v719 = vsel %vm709, %v705, 1326507024
  %v720 = vsel %vm708, %v702, %v719
  %v721 = vsel %vm707, %v718, %v720
  %v722 = vshll.u32 %v682, 8
  %v723 = vmul.u32.u64.compose %v722, %v721
  %v724 = vextract.low.u32 %v723
  %v725 = vextract.high.u32 %v723
  %v726 = vmul.u32.u64.compose %v722, %v717
  %v727 = vextract.low.u32 %v726
  %v728 = vextract.high.u32 %v726
  %v729 = vmul.u32 %v722, %v713
  %v730 = vadd.s32 %v725, %v727
  %vm731 = vc.u32 %v725, %v727
  %v732 = vadd.s32 %v728, 1
  %v733 = vsel %vm731, %v732, %v728
  %v734 = vadd.s32 %v729, %v733
  %v735 = vadd.s32 %v734, 536870912
  %v736 = vshrl.u32 %v735, 30
  %v737 = vshll.u32 %v736, 30
  %v738 = vsub.s32 %v734, %v737
  %vm739 = vcmp.lt.s32.totalorder %v738, 0
  %v740 = vsub.s32 0, %v738
  %v741 = vsel %vm739, %v740, %v738
  %v742 = vclz %v741
  %v743 = vsub.s32 %v742, 2
  %vm744 = vcmp.gt.s32.totalorder 0, %v743
  %v745 = vsel %vm744, 0, %v743
  %v746 = vsub.s32 32, %v745
  %v747 = vshll.u32 %v738, %v745
  %v748 = vshrl.u32 %v730, %v746
  %v749 = vor.u32 %v747, %v748
  %v750 = vsub.s32 4294967266, %v745
  %v751 = vadd.s32 %v750, 127
  %v752 = vshll.u32 %v751, 23
  %v753 = vor.u32 4788187, %v752
  %v754 = vand.u32 2147483647, %v753
  %v756 = vcvt.s32.f32 %v749
  %v757 = vmul.f32 %v756, %v754
  %v758 = vxor.u32 %v757, 2147483648
  %v759 = vsel %vm676, %v758, %v757
  %v760 = vsub.s32 4, %v736
  %v761 = vsel %vm676, %v760, %v736
  %v762 = vsel %vm675, %v48, %v759
  %v763 = vsel %vm675, 0, %v761
  %v764 = vcosq.f32.pop %v762
  %v765 = vsinq.f32.pop %v762
  %vm766 = vweird.f32 %v48
  %v767 = vadd.s32 %v763, 3
  %v768 = vand.u32 %v767, 3
  %vm769 = vcmp.lt.s32.totalorder %v768, 2
  %vm770 = vcmp.eq.s32.totalorder %v768, 0
  %v771 = vxor.u32 %v765, 2147483648
  %v772 = vsel %vm770, %v764, %v771
  %vm773 = vcmp.eq.s32.totalorder %v768, 2
  %v774 = vxor.u32 %v764, 2147483648
  %v775 = vsel %vm773, %v774, %v765
  %v776 = vsel %vm769, %v772, %v775
  %v777 = vsel %vm766, nan, %v776
  %v778 = vand.u32 2147483647, %v49
  %vm779 = vcmp.le.f32.partialorder %v778, 0.7853982
  %vm780 = vcmp.lt.s32.totalorder %v49, 0
  %v781 = vand.u32 %v49, 2139095040
  %v782 = vshrl.u32 %v781, 23
  %v783 = vsub.s32 %v782, 127
  %v784 = vand.u32 2147483647, %v49
  %v785 = vand.u32 %v784, 8388607
  %v786 = vor.u32 %v785, 8388608
  %v787 = vsub.s32 0, %v786
  %v788 = vadd.s32 %v783, 1
  %vm789 = vcmp.gt.s32.totalorder %v788, 0
  %v790 = vsel %vm789, %v788, 0
  %v791 = vshrl.u32 %v790, 5
  %v792 = vand.u32 %v790, 31
  %v793 = vsub.s32 32, %v792
  %v794 = vshrl.u32 683565275, %v793
  %v795 = vshll.u32 683565275, %v792
  %v796 = vshrl.u32 2475754826, %v793
  %v797 = vor.u32 %v795, %v796
  %v798 = vshll.u32 2475754826, %v792
  %v799 = vshrl.u32 2131351028, %v793
  %v800 = vor.u32 %v798, %v799
  %v801 = vshll.u32 2131351028, %v792
  %v802 = vshrl.u32 2102212464, %v793
  %v803 = vor.u32 %v801, %v802
  %v804 = vshll.u32 2102212464, %v792
  %v805 = vshrl.u32 920167782, %v793
  %v806 = vor.u32 %v804, %v805
  %v807 = vshll.u32 920167782, %v792
  %v808 = vshrl.u32 1326507024, %v793
  %v809 = vor.u32 %v807, %v808
  %vm810 = vcmp.lt.s32.totalorder %v791, 1
  %vm811 = vcmp.lt.s32.totalorder %v791, 2
  %vm812 = vcmp.lt.s32.totalorder %v791, 3
  %vm813 = vcmp.lt.s32.totalorder %v791, 4
  %v814 = vsel %vm810, %v794, %v797
  %v815 = vsel %vm813, %v803, 2102212464
  %v816 = vsel %vm812, %v800, %v815
  %v817 = vsel %vm811, %v814, %v816
  %v818 = vsel %vm810, %v797, %v800
  %v819 = vsel %vm813, %v806, 920167782
  %v820 = vsel %vm812, %v803, %v819
  %v821 = vsel %vm811, %v818, %v820
  %v822 = vsel %vm810, %v800, %v803
  %v823 = vsel %vm813, %v809, 1326507024
  %v824 = vsel %vm812, %v806, %v823
  %v825 = vsel %vm811, %v822, %v824
  %v826 = vshll.u32 %v786, 8
  %v827 = vmul.u32.u64.compose %v826, %v825
  %v828 = vextract.low.u32 %v827
  %v829 = vextract.high.u32 %v827
  %v830 = vmul.u32.u64.compose %v826, %v821
  %v831 = vextract.low.u32 %v830
  %v832 = vextract.high.u32 %v830
  %v833 = vmul.u32 %v826, %v817
  %v834 = vadd.s32 %v829, %v831
  %vm835 = vc.u32 %v829, %v831
  %v836 = vadd.s32 %v832, 1
  %v837 = vsel %vm835, %v836, %v832
  %v838 = vadd.s32 %v833, %v837
  %v839 = vadd.s32 %v838, 536870912
  %v840 = vshrl.u32 %v839, 30
  %v841 = vshll.u32 %v840, 30
  %v842 = vsub.s32 %v838, %v841
  %vm843 = vcmp.lt.s32.totalorder %v842, 0
  %v844 = vsub.s32 0, %v842
  %v845 = vsel %vm843, %v844, %v842
  %v846 = vclz %v845
  %v847 = vsub.s32 %v846, 2
  %vm848 = vcmp.gt.s32.totalorder 0, %v847
  %v849 = vsel %vm848, 0, %v847
  %v850 = vsub.s32 32, %v849
  %v851 = vshll.u32 %v842, %v849
  %v852 = vshrl.u32 %v834, %v850
  %v853 = vor.u32 %v851, %v852
  %v854 = vsub.s32 4294967266, %v849
  %v855 = vadd.s32 %v854, 127
  %v856 = vshll.u32 %v855, 23
  %v857 = vor.u32 4788187, %v856
  %v858 = vand.u32 2147483647, %v857
  %v860 = vcvt.s32.f32 %v853
  %v861 = vmul.f32 %v860, %v858
  %v862 = vxor.u32 %v861, 2147483648
  %v863 = vsel %vm780, %v862, %v861
  %v864 = vsub.s32 4, %v840
  %v865 = vsel %vm780, %v864, %v840
  %v866 = vsel %vm779, %v49, %v863
  %v867 = vsel %vm779, 0, %v865
  %v868 = vcosq.f32.pop %v866
  %v869 = vsinq.f32.pop %v866
  %vm870 = vweird.f32 %v49
  %v871 = vadd.s32 %v867, 3
  %v872 = vand.u32 %v871, 3
  %vm873 = vcmp.lt.s32.totalorder %v872, 2
  %vm874 = vcmp.eq.s32.totalorder %v872, 0
  %v875 = vxor.u32 %v869, 2147483648
  %v876 = vsel %vm874, %v868, %v875
  %vm877 = vcmp.eq.s32.totalorder %v872, 2
  %v878 = vxor.u32 %v868, 2147483648
  %v879 = vsel %vm877, %v878, %v869
  %v880 = vsel %vm873, %v876, %v879
  %v881 = vsel %vm870, nan, %v880
  %882 = vst [vmem:[%s3] sm:$0xff] %v569
  %883 = vst [vmem:[%s3 + $0x8] sm:$0xff] %v673
  %884 = vst [vmem:[%s3 + $0x10] sm:$0xff] %v777
  %885 = vst [vmem:[%s3 + $0x18] sm:$0xff] %v881
  // Predicated region
  $region10: #{_build_rope_cache.1} parent=0 // pred_check
    _
  $region11: #{_build_rope_cache.1} parent=0 // pred_check_branch
    %887 = sbr.rel (0) target = $region13
  $region12: #{_build_rope_cache.1} parent=0 // pred_region
    _
  $region13: #{_build_rope_cache.1} parent=0 // pred_fallthru
    _
  // Predicated region
  $region14: #{_build_rope_cache.1} parent=0 // pred_check
    _
  $region15: #{_build_rope_cache.1} parent=0 // pred_check_branch
    %889 = sbr.rel (0) target = $region17
  $region16: #{_build_rope_cache.1} parent=0 // pred_region
    _
  $region17: #{_build_rope_cache.1} parent=0 // pred_fallthru
    _
  // Predicated region
  $region18: #{_build_rope_cache.1} parent=0 // pred_check
    _
  $region19: #{_build_rope_cache.1} parent=0 // pred_check_branch
    %891 = sbr.rel (0) target = $region21
  $region20: #{_build_rope_cache.1} parent=0 // pred_region
    _
  $region21: #{_build_rope_cache.1} parent=0 // pred_fallthru
    _
  // Predicated region
  $region22: #{_build_rope_cache.1} parent=0 // pred_check
    _
  $region23: #{_build_rope_cache.1} parent=0 // pred_check_branch
    %893 = sbr.rel (0) target = $region25
  $region24: #{_build_rope_cache.1} parent=0 // pred_region
    _
  $region25: #{_build_rope_cache.1} parent=0 // pred_fallthru
    _

</llo_original>
